<compile_context>
chip_gen: v7x
topology: tpu7x:2x2x1
jax: 0.10.0
libtpu: 0.0.40
codegen_flags: <defaults>
</compile_context>

<pallas_src>
import functools
import math

import jax
import jax.numpy as jnp
from jax.experimental import pallas as pl
from jax.experimental.pallas import tpu as pltpu


def _round_up(x, m):
    return (x + m - 1) // m * m


def _embedding_kernel(idx_ref, tbl_ref, out_ref, *, scale):
    # idx_ref: (T, 1) int32 tile of token ids (padded rows hold 0)
    # tbl_ref: (vocab_p, d_p) full table block, resident in VMEM
    # out_ref: (T, d_p)
    ids = idx_ref[...]                                        # (T, 1)
    t = ids.shape[0]
    vocab_p = tbl_ref.shape[0]
    iota = jax.lax.broadcasted_iota(jnp.int32, (t, vocab_p), 1)
    # One-hot built directly in the table's dtype (exact 0/1 even in bf16) so
    # a bf16 table runs the MXU at full rate instead of f32 emulation.
    onehot = (ids == iota).astype(tbl_ref.dtype)              # (T, vocab_p)
    gathered = jnp.dot(onehot, tbl_ref[...],
                       preferred_element_type=jnp.float32)    # (T, d_p) f32
    out_ref[...] = (gathered * scale).astype(out_ref.dtype)


def embedding_forward(event, table, *, tile_tokens=256, compute_dtype=None):
    """event: (B, S) int; table: (vocab, d) -> (B, S, d) in table's dtype.

    tile_tokens: token-tile size along flattened B*S (rounded to a multiple
                 of 8; default 256 fills the 256-wide MXU on v6e/v7x and is a
                 multiple of 128 for v5e).
    compute_dtype: optional dtype (e.g. jnp.bfloat16) for the in-kernel
                   one-hot matmul; output stays in the original table dtype.
    """
    B, S = event.shape
    vocab, d = table.shape
    out_dtype = table.dtype
    scale = math.sqrt(float(d))

    if compute_dtype is not None:
        table = table.astype(compute_dtype)

    # Lane-dense layout: embedding dim to a multiple of 128 (unmasked vst),
    # vocab to a multiple of 8 (f32 sublane). Padding rows are zero and never
    # selected; padded columns are sliced off below.
    d_p = _round_up(d, 128)
    vocab_p = _round_up(vocab, 8)
    if (vocab_p, d_p) != (vocab, d):
        table = jnp.pad(table, ((0, vocab_p - vocab), (0, d_p - d)))

    # Flatten and pad the token axis so any (B, S) works with large tiles.
    N = B * S
    tile = max(8, min(int(tile_tokens), _round_up(N, 8)))
    tile = _round_up(tile, 8)
    N_p = _round_up(N, tile)
    idx_flat = event.reshape(N).astype(jnp.int32)
    if N_p != N:
        idx_flat = jnp.pad(idx_flat, (0, N_p - N))   # pad rows gather row 0
    idx_flat = idx_flat.reshape(N_p, 1)

    grid = (N_p // tile,)

    # Explicit VMEM budget: double-buffered table + idx + output tiles plus
    # margin (defaults are only 16 MiB scoped on v5e / 32 MiB on v6e/v7x).
    itemsize = jnp.dtype(table.dtype).itemsize
    est = 2 * (vocab_p * d_p * itemsize          # table (double-buffered)
               + tile * d_p * 4                  # output tile (f32 worst case)
               + tile * 4)                       # idx tile
    vmem_limit = int(min(max(2 * est, 32 * 1024 * 1024), 100 * 1024 * 1024))

    kernel = functools.partial(_embedding_kernel, scale=scale)

    out_flat = pl.pallas_call(
        kernel,
        out_shape=jax.ShapeDtypeStruct((N_p, d_p), out_dtype),
        grid_spec=pltpu.PrefetchScalarGridSpec(
            num_scalar_prefetch=0,
            grid=grid,
            in_specs=[
                pl.BlockSpec((tile, 1), lambda i: (i, 0)),
                pl.BlockSpec((vocab_p, d_p), lambda i: (0, 0)),
            ],
            out_specs=pl.BlockSpec((tile, d_p), lambda i: (i, 0)),
        ),
        compiler_params=pltpu.CompilerParams(
            dimension_semantics=("parallel",),
            vmem_limit_bytes=vmem_limit),
    )(idx_flat, table)

    return out_flat[:N, :d].reshape(B, S, d)


if __name__ == "__main__":
    # Small, deterministic setup consistent with the module.
    vocab, d = 32, 128
    batch, seq = 2, 8

    key = jax.random.PRNGKey(0)
    k_tbl, k_idx = jax.random.split(key)

    # nn.Embedding default init: weight ~ N(0, 1)
    table = jax.random.normal(k_tbl, (vocab, d), dtype=jnp.float32)
    event = jax.random.randint(k_idx, (batch, seq), 0, vocab, dtype=jnp.int32)

    scale = math.sqrt(float(d))

    # Exact f32 path.
    out = embedding_forward(event, table)
    out = jax.block_until_ready(out)
    ref = table[event] * scale
    assert out.shape == (batch, seq, d)
    assert jnp.allclose(out, ref, atol=1e-5, rtol=1e-5)

    # bf16 MXU path: one-hot is exact, only table rounding changes numerics.
    out_bf16 = embedding_forward(event, table, compute_dtype=jnp.bfloat16)
    out_bf16 = jax.block_until_ready(out_bf16)
    ref_bf16 = table.astype(jnp.bfloat16).astype(jnp.float32)[event] * scale
    assert jnp.allclose(out_bf16, ref_bf16, atol=1e-2, rtol=1e-2)

    print("KERNEL_OK")
</pallas_src>

<mosaic_0001>
module attributes {stable_mosaic.version = 11 : i64} {
  func.func @_embedding_kernel(%arg0: i32, %arg1: memref<16x1xi32, #tpu.memory_space<vmem>>, %arg2: memref<32x128xf32, #tpu.memory_space<vmem>>, %arg3: memref<16x128xf32, #tpu.memory_space<vmem>>) attributes {dimension_semantics = [#tpu.dimension_semantics<parallel>], iteration_bounds = array<i64: 1>, scalar_prefetch = 0 : i64, scratch_operands = 0 : i64, tpu.core_type = #tpu.core_type<tc>, window_params = [{transform_indices = @transform_0, window_bounds = array<i64: 16, 1>}, {pipeline_mode = #tpu.pipeline_mode<synchronous>, transform_indices = @transform_1, window_bounds = array<i64: 32, 128>}, {transform_indices = @transform_2, window_bounds = array<i64: 16, 128>}]} {
    %c0 = arith.constant 0 : index
    %c0_0 = arith.constant 0 : index
    %0 = vector.load %arg1[%c0, %c0_0] : memref<16x1xi32, #tpu.memory_space<vmem>>, vector<16x1xi32>
    %1 = tpu.iota {dimensions = array<i32: 1>} : vector<16x32xi32>
    %2 = vector.broadcast %0 : vector<16x1xi32> to vector<16x32xi32>
    %3 = arith.cmpi eq, %2, %1 : vector<16x32xi32>
    %4 = arith.extui %3 : vector<16x32xi1> to vector<16x32xi32>
    %5 = arith.sitofp %4 : vector<16x32xi32> to vector<16x32xf32>
    %c0_1 = arith.constant 0 : index
    %c0_2 = arith.constant 0 : index
    %6 = vector.load %arg2[%c0_1, %c0_2] : memref<32x128xf32, #tpu.memory_space<vmem>>, vector<32x128xf32>
    %cst = arith.constant dense<0.000000e+00> : vector<16x128xf32>
    %7 = tpu.matmul %5, %6, %cst {dimension_numbers = #tpu.dot_dimension_numbers<[1], [0], [0], [1], [0, 0, 1, 1], [], []>} : vector<16x32xf32>, vector<32x128xf32>, vector<16x128xf32> -> vector<16x128xf32>
    %cst_3 = arith.constant 11.3137083 : f32
    %8 = vector.broadcast %cst_3 : f32 to vector<16x128xf32>
    %9 = arith.mulf %7, %8 : vector<16x128xf32>
    %c0_4 = arith.constant 0 : index
    %c0_5 = arith.constant 0 : index
    %10 = vector.load %arg3[%c0_4, %c0_5] : memref<16x128xf32, #tpu.memory_space<vmem>>, vector<16x128xf32>
    tpu.vector_store %arg3[%c0_4, %c0_5], %9 {strides = array<i32>} : memref<16x128xf32, #tpu.memory_space<vmem>>, vector<16x128xf32>,
    return
  }
  func.func @transform_0(%arg0: i32) -> (i32, i32) {
    %c0_i32 = arith.constant 0 : i32
    %c0_i32_0 = arith.constant 0 : i32
    return %arg0, %c0_i32 : i32, i32
  }
  func.func @transform_1(%arg0: i32) -> (i32, i32) {
    %c0_i32 = arith.constant 0 : i32
    %c0_i32_0 = arith.constant 0 : i32
    %c0_i32_1 = arith.constant 0 : i32
    return %c0_i32, %c0_i32_0 : i32, i32
  }
  func.func @transform_2(%arg0: i32) -> (i32, i32) {
    %c0_i32 = arith.constant 0 : i32
    %c0_i32_0 = arith.constant 0 : i32
    return %arg0, %c0_i32 : i32, i32
  }
}

</mosaic_0001>

<llo_original>
// kernel: tpu_custom_call.1
$region0: #{tpu_custom_call.1}
  #allocation0 [shape = 'u32[]', space=smem, size = 0x4, offset = 0x4, fixed_abs, tag = 'smem constant byte address 0x4 - core index']
  #allocation1 [shape = 'u32[144,128]{1,0:T(1,128)}', space=vmem, size = 0x12000, scoped, tag = 'internal scratch']
  %s0 = inlined_call_operand.vmem [shape: s32[16,1], index: 0, kind: input, shape index: {}]
  %s1 = inlined_call_operand.hbm [shape: f32[32,128], index: 1, kind: input, shape index: {}]
  %s2 = inlined_call_operand.hbm [shape: f32[16,128], index: 2, kind: output, shape index: {}]
  %s3 = sld [smem:[#allocation0]]
  $region22: #{tpu_custom_call.1} parent=0
    _
  %s5 = ssub.s32 1, %s3
  %s6 = scalar_select 0, %s5, %s3
  $region1: #{tpu_custom_call.1} parent=0
    #allocation2 [shape = 'u8[16384]{0}', space=vmem, size = 0x4000, scoped, tag = 'input window, operand 1, single buffered']
    #allocation3 [shape = 's32[1]{0}', space=sflag, size = 0x4, scoped, tag = 'scoped memory for tpu_custom_call.1']
    #allocation4 [shape = 's32[1]{0}', space=sflag, size = 0x4, scoped, tag = 'scoped memory for tpu_custom_call.1']
    #allocation5 [shape = 'u8[8192]{0}', space=vmem, size = 0x2000, scoped, tag = 'output window, operand 0, single buffered']
    %7 = vsyncpa [#allocation3], 0
    %8 = vsyncpa [#allocation4], 0
    // Predicated region
    $region2: #{tpu_custom_call.1} parent=1 // pred_check
      _
    $region3: #{tpu_custom_call.1} parent=1 // pred_check_branch
      %10 = sbr.rel (0) target = $region5
    $region4: #{tpu_custom_call.1} parent=1 // pred_region
      _
    $region5: #{tpu_custom_call.1} parent=1 // pred_fallthru
      _
    // Predicated region
    $region6: #{tpu_custom_call.1} parent=1 // pred_check
      _
    $region7: #{tpu_custom_call.1} parent=1 // pred_check_branch
      %12 = sbr.rel (0) target = $region9
    $region8: #{tpu_custom_call.1} parent=1 // pred_region
      %s14 = ssub.s32 512, 512
      %15 = vsyncadd [#allocation3], %s14
      %s16 = sshll.u32 [#allocation2], 4
      %s17 = int_to_ptr.vmem [resolvable:$true] %s16
      %22 = dma.hbm_to_vmem [thread:$0]  %s1, 512, %s17, [#allocation3], 128, 128, 8
    $region9: #{tpu_custom_call.1} parent=1 // pred_fallthru
      _
    // Predicated region
    $region10: #{tpu_custom_call.1} parent=1 // pred_check
      _
    $region11: #{tpu_custom_call.1} parent=1 // pred_check_branch
      %24 = sbr.rel (0) target = $region13
    $region12: #{tpu_custom_call.1} parent=1 // pred_region
      %25 = dma.done [#allocation3], 512
    $region13: #{tpu_custom_call.1} parent=1 // pred_fallthru
      _
    %v26 = vld [vmem:[%s0] sm:$0xff]
    %v27 = vld [vmem:[%s0 + $0x8] sm:$0xff]
    %v28 = vlaneseq
    %v29 = vand.u32 %v28, 127
    %30 = vset.pattern.permute.xlu0 0
    %31 = vperm.xlu0 %30, %v26
    %v32 = vpop.permute.xlu0 %31
    %33 = vset.pattern.permute.xlu0 0
    %34 = vperm.xlu0 %33, %v27
    %v35 = vpop.permute.xlu0 %34
    %vm36 = vcmp.eq.s32.totalorder %v32, %v29
    %vm37 = vcmp.eq.s32.totalorder %v35, %v29
    %v38 = vsel %vm36, 1, 0
    %v39 = vsel %vm37, 1, 0
    %v40 = vcvt.s32.f32 %v38
    %v41 = vcvt.s32.f32 %v39
    %v42 = vld [vmem:[#allocation2] sm:$0xff]
    %v43 = vld [vmem:[#allocation2 + $0x8] sm:$0xff]
    %v44 = vld [vmem:[#allocation2 + $0x10] sm:$0xff]
    %v45 = vld [vmem:[#allocation2 + $0x18] sm:$0xff]
    %vm46 = vcmask 261120
    %v48 = vsel %vm46, %v40, 0
    %v51 = vsel %vm46, %v41, 0
    %53 = vmatprep.subr.mxu0 0.0
    %54 = vmatpush1.msra.mxu0 %v42
    %55 = vmatprep.subr.mxu0 0.0
    %56 = vmatpush1.msra.mxu0 %v43
    %57 = vmatprep.subr.mxu0 0.0
    %58 = vmatpush1.msra.mxu0 %v44
    %59 = vmatprep.subr.mxu0 0.0
    %60 = vmatpush1.msra.mxu0 %v45
    %61 = vmatprep.subr.mxu0 0.0
    %62 = vmatpush1.msra.mxu0 0.0
    %63 = vmatprep.subr.mxu0 0.0
    %64 = vmatpush1.msra.mxu0 0.0
    %65 = vmatprep.subr.mxu0 0.0
    %66 = vmatpush1.msra.mxu0 0.0
    %67 = vmatprep.subr.mxu0 0.0
    %68 = vmatpush1.msra.mxu0 0.0
    %69 = vmatprep.subr.mxu0 0.0
    %70 = vmatpush1.msra.mxu0 0.0
    %71 = vmatprep.subr.mxu0 0.0
    %72 = vmatpush1.msra.mxu0 0.0
    %73 = vmatprep.subr.mxu0 0.0
    %74 = vmatpush1.msra.mxu0 0.0
    %75 = vmatprep.subr.mxu0 0.0
    %76 = vmatpush1.msra.mxu0 0.0
    %77 = vmatprep.subr.mxu0 0.0
    %78 = vmatpush1.msra.mxu0 0.0
    %79 = vmatprep.subr.mxu0 0.0
    %80 = vmatpush1.msra.mxu0 0.0
    %81 = vmatprep.subr.mxu0 0.0
    %82 = vmatpush1.msra.mxu0 0.0
    %83 = vmatprep.subr.mxu0 0.0
    %84 = vmatpush1.msra.mxu0 0.0
    %85 = vmatprep.subr.mxu0 0.0
    %86 = vmatpush1.msra.mxu0 0.0
    %87 = vmatprep.subr.mxu0 0.0
    %88 = vmatpush1.msra.mxu0 0.0
    %89 = vmatprep.subr.mxu0 0.0
    %90 = vmatpush1.msra.mxu0 0.0
    %91 = vmatprep.subr.mxu0 0.0
    %92 = vmatpush1.msra.mxu0 0.0
    %93 = vmatprep.subr.mxu0 0.0
    %94 = vmatpush1.msra.mxu0 0.0
    %95 = vmatprep.subr.mxu0 0.0
    %96 = vmatpush1.msra.mxu0 0.0
    %97 = vmatprep.subr.mxu0 0.0
    %98 = vmatpush1.msra.mxu0 0.0
    %99 = vmatprep.subr.mxu0 0.0
    %100 = vmatpush1.msra.mxu0 0.0
    %101 = vmatprep.subr.mxu0 0.0
    %102 = vmatpush1.msra.mxu0 0.0
    %103 = vmatprep.subr.mxu0 0.0
    %104 = vmatpush1.msra.mxu0 0.0
    %105 = vmatprep.subr.mxu0 0.0
    %106 = vmatpush1.msra.mxu0 0.0
    %107 = vmatprep.subr.mxu0 0.0
    %108 = vmatpush1.msra.mxu0 0.0
    %109 = vmatprep.subr.mxu0 0.0
    %110 = vmatpush1.msra.mxu0 0.0
    %111 = vmatprep.subr.mxu0 0.0
    %112 = vmatpush1.msra.mxu0 0.0
    %113 = vmatprep.subr.mxu0 0.0
    %114 = vmatpush1.msra.mxu0 0.0
    %115 = vmatprep.subr.mxu0 0.0
    %116 = vmatpush1.msra.mxu0 0.0
    %117 = vmatprep.mubr.f32.mxu0 0.0
    %118 = vmatmul.mubr.f32.gmra.mrb[0].mxu0 %v48
    %v119 = vpop.f32.mrb[0].mxu0
    %v120 = vadd.f32 0.0, %v119
    %v121 = vpop.f32.mrb[0].mxu0
    %122 = vmatprep.mubr.f32.mxu0 0.0
    %123 = vmatmul.mubr.f32.gmra.mrb[0].mxu0 %v51
    %v124 = vpop.f32.mrb[0].mxu0
    %v125 = vadd.f32 0.0, %v124
    %v126 = vpop.f32.mrb[0].mxu0
    %127 = vdwg.mxu0
    %v128 = vmul.f32 %v120, 11.313708
    %v129 = vmul.f32 %v125, 11.313708
    %130 = vst [vmem:[#allocation5] sm:$0xff] %v128
    %131 = vst [vmem:[#allocation5 + $0x8] sm:$0xff] %v129
    // Predicated region
    $region14: #{tpu_custom_call.1} parent=1 // pred_check
      _
    $region15: #{tpu_custom_call.1} parent=1 // pred_check_branch
      %133 = sbr.rel (0) target = $region17
    $region16: #{tpu_custom_call.1} parent=1 // pred_region
      %s135 = ssub.s32 256, 256
      %136 = vsyncadd [#allocation4], %s135
      %s137 = sshll.u32 [#allocation5], 4
      %s138 = int_to_ptr.vmem [resolvable:$true] %s137
      %143 = dma.vmem_to_hbm [thread:$0]  %s138, 256, %s2, [#allocation4], 128, 128, 8
    $region17: #{tpu_custom_call.1} parent=1 // pred_fallthru
      _
    // Predicated region
    $region18: #{tpu_custom_call.1} parent=1 // pred_check
      _
    $region19: #{tpu_custom_call.1} parent=1 // pred_check_branch
      %145 = sbr.rel (0) target = $region21
    $region20: #{tpu_custom_call.1} parent=1 // pred_region
      %146 = dma.done [#allocation4], 256
    $region21: #{tpu_custom_call.1} parent=1 // pred_fallthru
      _
    %147 = vsyncpa [#allocation3], 1
    %148 = vsyncpa [#allocation4], 1

</llo_original>
